<compile_context>
chip_gen: v5e
topology: v5e:2x2
jax: 0.10.0
libtpu: 0.0.40
codegen_flags: <defaults>
</compile_context>

<pallas_src>
import jax
import jax.numpy as jnp
from jax.experimental import pallas as pl
from jax.experimental.pallas import tpu as pltpu

# ----- synthetic "args" (deterministic, small) --------------------------------
ENTITY_DIM = 32          # args.entity_dim (stands in for the BERT CLS dim)
HIDDEN_DIM = 32          # args.hidden_dim
N_PARTITIONS = 8         # args.n_partitions
NUM_HIDDEN_LAYERS = 2    # args.num_hidden_layers (in -> hid, hid -> hid, hid -> P)

GAMMA_COEFF = 10.0       # args.gamma_coeff
MARGIN = 0.1             # args.margin
STRENGTH_ALPHA = 0.5     # args.strength_alpha
# use_volume_weights=True, regularize_volume=True, score_type='possibility',
# partition_reg_type='sigmoid'  -> the code paths implemented below.

# ----- packed layout constants -------------------------------------------------
GROUP = 32               # lane width of one head group (== ENTITY_DIM == HIDDEN_DIM)
PACKED_W = 4 * GROUP     # 128: [parent | neg_parent | child | carry/pad]
BIAS_ROW = 3 * GROUP     # lane 96 carries a constant 1.0 -> bias row of each W
PART_W_PAD = -1e30       # sigmoid(-1e30) == 0 exactly -> masks padded lanes

N_SAMPLES = 256          # triples per forward call (batched per perf review)
TILE_N = 64              # samples per grid step (multiple of 8; lane-dense out)


# ----- numerics helpers (in-kernel, all f32) -----------------------------------
def _sigmoid(x):
    # branch-stable sigmoid; single EUP reciprocal instead of two divides.
    z = jnp.exp(-jnp.abs(x))
    inv = pl.reciprocal(1.0 + z, approx=True)
    return jnp.where(x >= 0.0, inv, z * inv)


def _log_sigmoid(x):
    # stable: logsigmoid(x) = min(x, 0) - log(1 + exp(-|x|))
    return jnp.minimum(x, 0.0) - jnp.log(1.0 + jnp.exp(-jnp.abs(x)))


# ----- the fused kernel ---------------------------------------------------------
def fuzzqe_kernel(p_ref, n_ref, c_ref, w_ref, pw_ref, out_ref):
    """One sample tile of the fused FuzzyMapping heads + pair losses.

    p_ref, n_ref, c_ref : (TILE_N, D) f32   parent / neg-parent / child CLS
    w_ref               : (3*128, 128) bf16 block-diagonal weights, bias folded
    pw_ref              : (1, 32) f32       partition_weights, -1e30 lane pad
    out_ref             : (TILE_N, 128) f32 per-sample lanes 0/1/2 =
                          -logsigmoid term, (pos/child-1)^2, (neg/child)^2
    """
    tn = p_ref.shape[0]

    # pack the three CLS groups + constant-one carry lane into one 128-wide row
    lane = jax.lax.broadcasted_iota(jnp.int32, (tn, GROUP), 1)
    carry = jnp.where(lane == 0, 1.0, 0.0).astype(jnp.float32)   # lane 96 == 1.0
    x = jnp.concatenate([p_ref[...], n_ref[...], c_ref[...], carry], axis=-1)

    # fused [parent | parent | child] MLP: 3 block-diagonal MXU pushes, biases
    # come from the constant-one lane * bias row of each weight block.
    w0 = w_ref[0 * PACKED_W:1 * PACKED_W, :]
    w1 = w_ref[1 * PACKED_W:2 * PACKED_W, :]
    w2 = w_ref[2 * PACKED_W:3 * PACKED_W, :]

    h = jnp.dot(x.astype(jnp.bfloat16), w0, preferred_element_type=jnp.float32)
    h = jnp.maximum(h, 0.0)
    h = jnp.dot(h.astype(jnp.bfloat16), w1, preferred_element_type=jnp.float32)
    h = jnp.maximum(h, 0.0)
    o = jnp.dot(h.astype(jnp.bfloat16), w2, preferred_element_type=jnp.float32)
    emb = _sigmoid(o)                                   # (tn, 128) f32 fuzzy sets

    parent = emb[:, 0 * GROUP:1 * GROUP]                # logits in lanes 0:P
    neg = emb[:, 1 * GROUP:2 * GROUP]
    child = emb[:, 2 * GROUP:3 * GROUP]

    # partition_regularizer('sigmoid')(partition_weights); padded lanes -> 0.0,
    # which masks the sigmoid(0)=0.5 garbage lanes of the padded heads.
    w_sig = _sigmoid(pw_ref[...])                       # (1, 32)
    cw = child * w_sig                                  # (tn, 32)

    # cal_pair_fuzzy_possibility / cal_single_fuzzy_possibility
    pos_pair = jnp.sum(cw * parent, axis=-1, keepdims=True)   # (tn, 1)
    neg_pair = jnp.sum(cw * neg, axis=-1, keepdims=True)
    child_poss = jnp.sum(cw, axis=-1, keepdims=True)

    # parent_child_possibility_loss (per-sample term) + asymmetry terms
    diff = -_log_sigmoid(GAMMA_COEFF * (pos_pair - MARGIN - neg_pair))
    inv_child = pl.reciprocal(child_poss, approx=False)
    asym_p = jnp.square(pos_pair * inv_child - 1.0)
    asym_n = jnp.square(neg_pair * inv_child)

    # lane-dense per-sample output row (single unmasked 128-lane store)
    lane_out = jax.lax.broadcasted_iota(jnp.int32, (tn, PACKED_W), 1)
    out = jnp.where(lane_out == 0, diff,
          jnp.where(lane_out == 1, asym_p,
          jnp.where(lane_out == 2, asym_n, 0.0)))
    out_ref[...] = out


# ----- host-side packing --------------------------------------------------------
def pack_weight_slab(params):
    """Pack the 12 MLP arrays into one (384, 128) bf16 block-diagonal slab.

    For each layer k, rows k*128:(k+1)*128 hold:
      [ 0:32,  0:ow] = parent W_k     (parent group)
      [32:64, 32:32+ow] = parent W_k  (negative-parent group)
      [64:96, 64:64+ow] = child  W_k  (child group)
      row 96           = [parent b_k | parent b_k | child b_k | carry]
      (carry = 1.0 at [96, 96] for hidden layers so the constant-one lane
       propagates through the ReLUs; everything else is zero.)
    """
    (pw0, pb0, pw1, pb1, pw2, pb2,
     cw0, cb0, cw1, cb1, cw2, cb2, _part_w) = params
    assert ENTITY_DIM == HIDDEN_DIM == GROUP   # simplifies the block layout

    def blk(pw, pb, cw, cb, carry_one):
        ow = pw.shape[1]
        w = jnp.zeros((PACKED_W, PACKED_W), jnp.float32)
        w = w.at[0 * GROUP:1 * GROUP, 0 * GROUP:0 * GROUP + ow].set(pw)
        w = w.at[1 * GROUP:2 * GROUP, 1 * GROUP:1 * GROUP + ow].set(pw)
        w = w.at[2 * GROUP:3 * GROUP, 2 * GROUP:2 * GROUP + ow].set(cw)
        w = w.at[BIAS_ROW, 0 * GROUP:0 * GROUP + ow].set(pb[0])
        w = w.at[BIAS_ROW, 1 * GROUP:1 * GROUP + ow].set(pb[0])
        w = w.at[BIAS_ROW, 2 * GROUP:2 * GROUP + ow].set(cb[0])
        if carry_one:
            w = w.at[BIAS_ROW, BIAS_ROW].set(1.0)
        return w

    slab = jnp.concatenate([blk(pw0, pb0, cw0, cb0, True),
                            blk(pw1, pb1, cw1, cb1, True),
                            blk(pw2, pb2, cw2, cb2, False)], axis=0)
    return slab.astype(jnp.bfloat16)          # bf16 MXU operands (f32 accumulate)


def pack_partition_weights(part_w):
    """(1, P) partition weights -> (1, 32) f32 row, -1e30 in the padded lanes."""
    pad = jnp.full((1, GROUP - N_PARTITIONS), PART_W_PAD, jnp.float32)
    return jnp.concatenate([part_w.astype(jnp.float32), pad], axis=-1)


# ----- wrapper ------------------------------------------------------------------
@jax.jit
def fuzzqe_forward(cls_parent, cls_child, cls_neg, w_slab, part_w_pad):
    """Batched forward: one pallas_call over N_SAMPLES triples, parallel grid."""
    n, d = cls_parent.shape
    assert n % TILE_N == 0 and d == ENTITY_DIM
    grid = (n // TILE_N,)

    cls_spec = pl.BlockSpec((TILE_N, d), lambda i: (i, 0))
    w_spec = pl.BlockSpec(w_slab.shape, lambda i: (0, 0))        # resident
    pw_spec = pl.BlockSpec(part_w_pad.shape, lambda i: (0, 0))   # resident
    out_spec = pl.BlockSpec((TILE_N, PACKED_W), lambda i: (i, 0))

    flops = 2 * n * PACKED_W * PACKED_W * 3
    transcendentals = n * (PACKED_W + 3) + GROUP
    bytes_accessed = (3 * n * d * 4 + w_slab.size * 2
                      + part_w_pad.size * 4 + n * PACKED_W * 4)

    per_sample = pl.pallas_call(
        fuzzqe_kernel,
        out_shape=jax.ShapeDtypeStruct((n, PACKED_W), jnp.float32),
        grid=grid,
        in_specs=[cls_spec, cls_spec, cls_spec, w_spec, pw_spec],
        out_specs=out_spec,
        compiler_params=pltpu.CompilerParams(
            dimension_semantics=("parallel",)),      # 2 TCs on v7x; no-op v5e/v6e
        cost_estimate=pl.CostEstimate(flops=flops,
                                      transcendentals=transcendentals,
                                      bytes_accessed=bytes_accessed),
    )(cls_parent, cls_neg, cls_child, w_slab, part_w_pad)

    # batch means + scalar composition (tiny epilogue; keeps the grid parallel)
    possibility_loss = jnp.mean(per_sample[:, 0])
    asym_loss = jnp.mean(per_sample[:, 1]) + jnp.mean(per_sample[:, 2])
    total_loss = possibility_loss + STRENGTH_ALPHA * asym_loss
    return total_loss, possibility_loss, asym_loss


# ----- pure-JAX reference (mirrors the PyTorch math, f32) -----------------------
def reference_forward(cls_parent, cls_child, cls_neg, params):
    (pw0, pb0, pw1, pb1, pw2, pb2,
     cw0, cb0, cw1, cb1, cw2, cb2, part_w) = params

    def mlp(x, w0, b0, w1, b1, w2, b2):
        h = jax.nn.relu(x @ w0 + b0)
        h = jax.nn.relu(h @ w1 + b1)
        return jax.nn.sigmoid(h @ w2 + b2)

    parent = mlp(cls_parent, pw0, pb0, pw1, pb1, pw2, pb2)
    neg = mlp(cls_neg, pw0, pb0, pw1, pb1, pw2, pb2)
    child = mlp(cls_child, cw0, cb0, cw1, cb1, cw2, cb2)
    w = jax.nn.sigmoid(part_w)
    pos_pair = jnp.sum(child * parent * w, axis=-1)
    child_poss = jnp.sum(child * w, axis=-1)
    neg_pair = jnp.sum(child * neg * w, axis=-1)
    diff = -jax.nn.log_sigmoid(GAMMA_COEFF * (pos_pair - MARGIN - neg_pair))
    poss_loss = jnp.mean(diff)
    asym = jnp.mean(jnp.square(pos_pair / child_poss - 1.0)) + \
           jnp.mean(jnp.square(neg_pair / child_poss))
    total = poss_loss + STRENGTH_ALPHA * asym
    return total, poss_loss, asym


def init_params(key):
    """Deterministic synthetic parameters (shapes from the module __init__)."""
    ks = jax.random.split(key, 12)

    def lin(kw, kb, fan_in, fan_out):
        w = 0.1 * jax.random.normal(kw, (fan_in, fan_out), jnp.float32)
        b = 0.05 * jax.random.normal(kb, (1, fan_out), jnp.float32)
        return w, b

    pw0, pb0 = lin(ks[0], ks[1], ENTITY_DIM, HIDDEN_DIM)
    pw1, pb1 = lin(ks[2], ks[3], HIDDEN_DIM, HIDDEN_DIM)
    pw2, pb2 = lin(ks[4], ks[5], HIDDEN_DIM, N_PARTITIONS)
    cw0, cb0 = lin(ks[6], ks[7], ENTITY_DIM, HIDDEN_DIM)
    cw1, cb1 = lin(ks[8], ks[9], HIDDEN_DIM, HIDDEN_DIM)
    cw2, cb2 = lin(ks[10], ks[11], HIDDEN_DIM, N_PARTITIONS)
    part_w = jnp.ones((1, N_PARTITIONS), jnp.float32)   # nn.Parameter(torch.ones(P))
    return (pw0, pb0, pw1, pb1, pw2, pb2,
            cw0, cb0, cw1, cb1, cw2, cb2, part_w)


if __name__ == "__main__":
    key = jax.random.PRNGKey(0)
    k_p, k_c, k_n, k_params = jax.random.split(key, 4)

    # pre-computed "CLS" embeddings standing in for the BERT encoder output
    cls_parent = jax.random.normal(k_p, (N_SAMPLES, ENTITY_DIM), jnp.float32)
    cls_child = jax.random.normal(k_c, (N_SAMPLES, ENTITY_DIM), jnp.float32)
    cls_neg = jax.random.normal(k_n, (N_SAMPLES, ENTITY_DIM), jnp.float32)

    params = init_params(k_params)
    w_slab = pack_weight_slab(params)          # packed once; reused across calls
    pw_pad = pack_partition_weights(params[-1])

    total, poss, asym = fuzzqe_forward(cls_parent, cls_child, cls_neg,
                                       w_slab, pw_pad)
    jax.block_until_ready((total, poss, asym))

    ref_total, ref_poss, ref_asym = reference_forward(cls_parent, cls_child,
                                                      cls_neg, params)
    # bf16 matmul operands -> looser tolerance than pure-f32 (per perf review)
    assert jnp.allclose(total, ref_total, atol=2e-2, rtol=2e-2), (total, ref_total)
    assert jnp.allclose(poss, ref_poss, atol=2e-2, rtol=2e-2), (poss, ref_poss)
    assert jnp.allclose(asym, ref_asym, atol=2e-2, rtol=2e-2), (asym, ref_asym)

    print("KERNEL_OK")
</pallas_src>

<mosaic_0001>
module attributes {stable_mosaic.version = 11 : i64} {
  func.func @fuzzqe_kernel(%arg0: i32, %arg1: memref<64x32xf32, #tpu.memory_space<vmem>>, %arg2: memref<64x32xf32, #tpu.memory_space<vmem>>, %arg3: memref<64x32xf32, #tpu.memory_space<vmem>>, %arg4: memref<384x128xbf16, #tpu.memory_space<vmem>>, %arg5: memref<1x32xf32, #tpu.memory_space<vmem>>, %arg6: memref<64x128xf32, #tpu.memory_space<vmem>>) attributes {dimension_semantics = [#tpu.dimension_semantics<parallel>], iteration_bounds = array<i64: 4>, scalar_prefetch = 0 : i64, scratch_operands = 0 : i64, tpu.core_type = #tpu.core_type<tc>, window_params = [{transform_indices = @transform_0, window_bounds = array<i64: 64, 32>}, {transform_indices = @transform_1, window_bounds = array<i64: 64, 32>}, {transform_indices = @transform_2, window_bounds = array<i64: 64, 32>}, {pipeline_mode = #tpu.pipeline_mode<synchronous>, transform_indices = @transform_3, window_bounds = array<i64: 384, 128>}, {pipeline_mode = #tpu.pipeline_mode<synchronous>, transform_indices = @transform_4, window_bounds = array<i64: 1, 32>}, {transform_indices = @transform_5, window_bounds = array<i64: 64, 128>}]} {
    %0 = tpu.iota {dimensions = array<i32: 1>} : vector<64x32xi32>
    %c0_i32 = arith.constant 0 : i32
    %1 = vector.broadcast %c0_i32 : i32 to vector<64x32xi32>
    %2 = arith.cmpi eq, %0, %1 : vector<64x32xi32>
    %cst = arith.constant 1.000000e+00 : f32
    %cst_0 = arith.constant 0.000000e+00 : f32
    %3 = vector.broadcast %cst : f32 to vector<64x32xf32>
    %4 = vector.broadcast %cst_0 : f32 to vector<64x32xf32>
    %5 = arith.select %2, %3, %4 : vector<64x32xi1>, vector<64x32xf32>
    %c0 = arith.constant 0 : index
    %c0_1 = arith.constant 0 : index
    %6 = vector.load %arg1[%c0, %c0_1] : memref<64x32xf32, #tpu.memory_space<vmem>>, vector<64x32xf32>
    %c0_2 = arith.constant 0 : index
    %c0_3 = arith.constant 0 : index
    %7 = vector.load %arg2[%c0_2, %c0_3] : memref<64x32xf32, #tpu.memory_space<vmem>>, vector<64x32xf32>
    %c0_4 = arith.constant 0 : index
    %c0_5 = arith.constant 0 : index
    %8 = vector.load %arg3[%c0_4, %c0_5] : memref<64x32xf32, #tpu.memory_space<vmem>>, vector<64x32xf32>
    %9 = tpu.concatenate %6, %7, %8, %5 in 1 : vector<64x32xf32>, vector<64x32xf32>, vector<64x32xf32>, vector<64x32xf32> -> vector<64x128xf32>
    %c0_6 = arith.constant 0 : index
    %c0_7 = arith.constant 0 : index
    %10 = vector.load %arg4[%c0_6, %c0_7] : memref<384x128xbf16, #tpu.memory_space<vmem>>, vector<128x128xbf16>
    %c128 = arith.constant 128 : index
    %c0_8 = arith.constant 0 : index
    %11 = vector.load %arg4[%c128, %c0_8] : memref<384x128xbf16, #tpu.memory_space<vmem>>, vector<128x128xbf16>
    %c256 = arith.constant 256 : index
    %c0_9 = arith.constant 0 : index
    %12 = vector.load %arg4[%c256, %c0_9] : memref<384x128xbf16, #tpu.memory_space<vmem>>, vector<128x128xbf16>
    %13 = arith.truncf %9 : vector<64x128xf32> to vector<64x128xbf16>
    %cst_10 = arith.constant dense<0.000000e+00> : vector<64x128xf32>
    %14 = tpu.matmul %13, %10, %cst_10 {dimension_numbers = #tpu.dot_dimension_numbers<[1], [0], [0], [1], [0, 0, 1, 1], [], []>} : vector<64x128xbf16>, vector<128x128xbf16>, vector<64x128xf32> -> vector<64x128xf32>
    %cst_11 = arith.constant 0.000000e+00 : f32
    %15 = vector.broadcast %cst_11 : f32 to vector<64x128xf32>
    %16 = arith.maximumf %14, %15 : vector<64x128xf32>
    %17 = arith.truncf %16 : vector<64x128xf32> to vector<64x128xbf16>
    %cst_12 = arith.constant dense<0.000000e+00> : vector<64x128xf32>
    %18 = tpu.matmul %17, %11, %cst_12 {dimension_numbers = #tpu.dot_dimension_numbers<[1], [0], [0], [1], [0, 0, 1, 1], [], []>} : vector<64x128xbf16>, vector<128x128xbf16>, vector<64x128xf32> -> vector<64x128xf32>
    %cst_13 = arith.constant 0.000000e+00 : f32
    %19 = vector.broadcast %cst_13 : f32 to vector<64x128xf32>
    %20 = arith.maximumf %18, %19 : vector<64x128xf32>
    %21 = arith.truncf %20 : vector<64x128xf32> to vector<64x128xbf16>
    %cst_14 = arith.constant dense<0.000000e+00> : vector<64x128xf32>
    %22 = tpu.matmul %21, %12, %cst_14 {dimension_numbers = #tpu.dot_dimension_numbers<[1], [0], [0], [1], [0, 0, 1, 1], [], []>} : vector<64x128xbf16>, vector<128x128xbf16>, vector<64x128xf32> -> vector<64x128xf32>
    %23 = math.absf %22 : vector<64x128xf32>
    %cst_15 = arith.constant 0.000000e+00 : f32
    %24 = vector.broadcast %cst_15 : f32 to vector<64x128xf32>
    %25 = arith.subf %24, %23 : vector<64x128xf32>
    %26 = math.exp %25 : vector<64x128xf32>
    %cst_16 = arith.constant 1.000000e+00 : f32
    %27 = vector.broadcast %cst_16 : f32 to vector<64x128xf32>
    %28 = arith.addf %27, %26 : vector<64x128xf32>
    %29 = tpu.reciprocal %28 {approx = true} : vector<64x128xf32> -> vector<64x128xf32>
    %cst_17 = arith.constant 0.000000e+00 : f32
    %30 = vector.broadcast %cst_17 : f32 to vector<64x128xf32>
    %31 = arith.cmpf oge, %22, %30 : vector<64x128xf32>
    %32 = arith.mulf %26, %29 : vector<64x128xf32>
    %33 = arith.select %31, %29, %32 : vector<64x128xi1>, vector<64x128xf32>
    %34 = vector.extract_strided_slice %33 {offsets = [0, 0], sizes = [64, 32], strides = [1, 1]} : vector<64x128xf32> to vector<64x32xf32>
    %35 = vector.extract_strided_slice %33 {offsets = [0, 32], sizes = [64, 32], strides = [1, 1]} : vector<64x128xf32> to vector<64x32xf32>
    %36 = vector.extract_strided_slice %33 {offsets = [0, 64], sizes = [64, 32], strides = [1, 1]} : vector<64x128xf32> to vector<64x32xf32>
    %c0_18 = arith.constant 0 : index
    %c0_19 = arith.constant 0 : index
    %37 = vector.load %arg5[%c0_18, %c0_19] : memref<1x32xf32, #tpu.memory_space<vmem>>, vector<1x32xf32>
    %38 = math.absf %37 : vector<1x32xf32>
    %cst_20 = arith.constant 0.000000e+00 : f32
    %39 = vector.broadcast %cst_20 : f32 to vector<1x32xf32>
    %40 = arith.subf %39, %38 : vector<1x32xf32>
    %41 = math.exp %40 : vector<1x32xf32>
    %cst_21 = arith.constant 1.000000e+00 : f32
    %42 = vector.broadcast %cst_21 : f32 to vector<1x32xf32>
    %43 = arith.addf %42, %41 : vector<1x32xf32>
    %44 = tpu.reciprocal %43 {approx = true} : vector<1x32xf32> -> vector<1x32xf32>
    %cst_22 = arith.constant 0.000000e+00 : f32
    %45 = vector.broadcast %cst_22 : f32 to vector<1x32xf32>
    %46 = arith.cmpf oge, %37, %45 : vector<1x32xf32>
    %47 = arith.mulf %41, %44 : vector<1x32xf32>
    %48 = arith.select %46, %44, %47 : vector<1x32xi1>, vector<1x32xf32>
    %49 = vector.broadcast %48 : vector<1x32xf32> to vector<64x32xf32>
    %50 = arith.mulf %36, %49 : vector<64x32xf32>
    %51 = arith.mulf %50, %34 : vector<64x32xf32>
    %cst_23 = arith.constant dense<0.000000e+00> : vector<64xf32>
    %52 = vector.multi_reduction <add>, %51, %cst_23 [1] : vector<64x32xf32> to vector<64xf32>
    %53 = vector.shape_cast %52 : vector<64xf32> to vector<64x1xf32>
    %54 = arith.mulf %50, %35 : vector<64x32xf32>
    %cst_24 = arith.constant dense<0.000000e+00> : vector<64xf32>
    %55 = vector.multi_reduction <add>, %54, %cst_24 [1] : vector<64x32xf32> to vector<64xf32>
    %56 = vector.shape_cast %55 : vector<64xf32> to vector<64x1xf32>
    %cst_25 = arith.constant dense<0.000000e+00> : vector<64xf32>
    %57 = vector.multi_reduction <add>, %50, %cst_25 [1] : vector<64x32xf32> to vector<64xf32>
    %58 = vector.shape_cast %57 : vector<64xf32> to vector<64x1xf32>
    %cst_26 = arith.constant 1.000000e-01 : f32
    %59 = vector.broadcast %cst_26 : f32 to vector<64x1xf32>
    %60 = arith.subf %53, %59 : vector<64x1xf32>
    %61 = arith.subf %60, %56 : vector<64x1xf32>
    %cst_27 = arith.constant 1.000000e+01 : f32
    %62 = vector.broadcast %cst_27 : f32 to vector<64x1xf32>
    %63 = arith.mulf %62, %61 : vector<64x1xf32>
    %cst_28 = arith.constant 0.000000e+00 : f32
    %64 = vector.broadcast %cst_28 : f32 to vector<64x1xf32>
    %65 = arith.minimumf %63, %64 : vector<64x1xf32>
    %66 = math.absf %63 : vector<64x1xf32>
    %cst_29 = arith.constant 0.000000e+00 : f32
    %67 = vector.broadcast %cst_29 : f32 to vector<64x1xf32>
    %68 = arith.subf %67, %66 : vector<64x1xf32>
    %69 = math.exp %68 : vector<64x1xf32>
    %cst_30 = arith.constant 1.000000e+00 : f32
    %70 = vector.broadcast %cst_30 : f32 to vector<64x1xf32>
    %71 = arith.addf %70, %69 : vector<64x1xf32>
    %72 = math.log %71 : vector<64x1xf32>
    %73 = arith.subf %65, %72 : vector<64x1xf32>
    %cst_31 = arith.constant 0.000000e+00 : f32
    %74 = vector.broadcast %cst_31 : f32 to vector<64x1xf32>
    %75 = arith.subf %74, %73 : vector<64x1xf32>
    %76 = tpu.reciprocal %58 : vector<64x1xf32> -> vector<64x1xf32>
    %77 = arith.mulf %53, %76 : vector<64x1xf32>
    %cst_32 = arith.constant 1.000000e+00 : f32
    %78 = vector.broadcast %cst_32 : f32 to vector<64x1xf32>
    %79 = arith.subf %77, %78 : vector<64x1xf32>
    %80 = arith.mulf %79, %79 : vector<64x1xf32>
    %81 = arith.mulf %56, %76 : vector<64x1xf32>
    %82 = arith.mulf %81, %81 : vector<64x1xf32>
    %83 = tpu.iota {dimensions = array<i32: 1>} : vector<64x128xi32>
    %c0_i32_33 = arith.constant 0 : i32
    %84 = vector.broadcast %c0_i32_33 : i32 to vector<64x128xi32>
    %85 = arith.cmpi eq, %83, %84 : vector<64x128xi32>
    %c1_i32 = arith.constant 1 : i32
    %86 = vector.broadcast %c1_i32 : i32 to vector<64x128xi32>
    %87 = arith.cmpi eq, %83, %86 : vector<64x128xi32>
    %c2_i32 = arith.constant 2 : i32
    %88 = vector.broadcast %c2_i32 : i32 to vector<64x128xi32>
    %89 = arith.cmpi eq, %83, %88 : vector<64x128xi32>
    %cst_34 = arith.constant 0.000000e+00 : f32
    %90 = vector.shape_cast %82 : vector<64x1xf32> to vector<64x1xf32>
    %91 = vector.broadcast %90 : vector<64x1xf32> to vector<64x128xf32>
    %92 = vector.broadcast %cst_34 : f32 to vector<64x128xf32>
    %93 = arith.select %89, %91, %92 : vector<64x128xi1>, vector<64x128xf32>
    %94 = vector.shape_cast %80 : vector<64x1xf32> to vector<64x1xf32>
    %95 = vector.broadcast %94 : vector<64x1xf32> to vector<64x128xf32>
    %96 = arith.select %87, %95, %93 : vector<64x128xi1>, vector<64x128xf32>
    %97 = vector.shape_cast %75 : vector<64x1xf32> to vector<64x1xf32>
    %98 = vector.broadcast %97 : vector<64x1xf32> to vector<64x128xf32>
    %99 = arith.select %85, %98, %96 : vector<64x128xi1>, vector<64x128xf32>
    %c0_35 = arith.constant 0 : index
    %c0_36 = arith.constant 0 : index
    %100 = vector.load %arg6[%c0_35, %c0_36] : memref<64x128xf32, #tpu.memory_space<vmem>>, vector<64x128xf32>
    tpu.vector_store %arg6[%c0_35, %c0_36], %99 {strides = array<i32>} : memref<64x128xf32, #tpu.memory_space<vmem>>, vector<64x128xf32>,
    return
  }
  func.func @transform_0(%arg0: i32) -> (i32, i32) {
    %c0_i32 = arith.constant 0 : i32
    %c0_i32_0 = arith.constant 0 : i32
    return %arg0, %c0_i32 : i32, i32
  }
  func.func @transform_1(%arg0: i32) -> (i32, i32) {
    %c0_i32 = arith.constant 0 : i32
    %c0_i32_0 = arith.constant 0 : i32
    return %arg0, %c0_i32 : i32, i32
  }
  func.func @transform_2(%arg0: i32) -> (i32, i32) {
    %c0_i32 = arith.constant 0 : i32
    %c0_i32_0 = arith.constant 0 : i32
    return %arg0, %c0_i32 : i32, i32
  }
  func.func @transform_3(%arg0: i32) -> (i32, i32) {
    %c0_i32 = arith.constant 0 : i32
    %c0_i32_0 = arith.constant 0 : i32
    %c0_i32_1 = arith.constant 0 : i32
    return %c0_i32, %c0_i32_0 : i32, i32
  }
  func.func @transform_4(%arg0: i32) -> (i32, i32) {
    %c0_i32 = arith.constant 0 : i32
    %c0_i32_0 = arith.constant 0 : i32
    %c0_i32_1 = arith.constant 0 : i32
    return %c0_i32, %c0_i32_0 : i32, i32
  }
  func.func @transform_5(%arg0: i32) -> (i32, i32) {
    %c0_i32 = arith.constant 0 : i32
    %c0_i32_0 = arith.constant 0 : i32
    return %arg0, %c0_i32 : i32, i32
  }
}

</mosaic_0001>

<llo_original>
// kernel: fuzzqe_forward.1
$region0: #{fuzzqe_forward.1}
  #allocation0 [shape = 'u32[]', space=smem, size = 0x4, offset = 0x4, fixed_abs, tag = 'smem constant byte address 0x4 - core index']
  #allocation1 [shape = 'u32[72,128]{1,0:T(1,128)}', space=vmem, size = 0x9000, scoped, tag = 'internal scratch']
  %s0 = inlined_call_operand.vmem [shape: f32[256,32], index: 0, kind: input, shape index: {}]
  %s1 = inlined_call_operand.vmem [shape: f32[256,32], index: 1, kind: input, shape index: {}]
  %s2 = inlined_call_operand.vmem [shape: f32[256,32], index: 2, kind: input, shape index: {}]
  %s3 = inlined_call_operand.vmem [shape: bf16[384,128], index: 3, kind: input, shape index: {}]
  %s4 = inlined_call_operand.vmem [shape: f32[1,32], index: 4, kind: input, shape index: {}]
  %s5 = inlined_call_operand.vmem [shape: f32[256,128], index: 5, kind: output, shape index: {}]
  %s6 = sld [smem:[#allocation0]]
  $region53: #{fuzzqe_forward.1} parent=0
    _
  %s8 = ssub.s32 1, %s6
  %s9 = scalar_select 0, %s8, %s6
  loop: start=0, step=1, limit=6
  $region2: #{fuzzqe_forward.1} parent=0 // loop_pre_header
    _
  $region3: #{fuzzqe_forward.1} parent=0 // loop_header
    %s11 = sphi 0, %s15
    %p12 = scmp.ge.s32.totalorder %s11, 6
    %s21 = sphi 0, %s23
    %s24 = sphi 0, %s21
    %s25 = sphi 0, %s24
    %s41 = sphi 0, %s25
    %s47 = sphi 0, %s49
    %s50 = sphi 0, %s47
    %s51 = sphi 0, %s50
    %s67 = sphi 0, %s51
    %s73 = sphi 0, %s75
    %s76 = sphi 0, %s73
    %s77 = sphi 0, %s76
    %s93 = sphi 0, %s77
    %s97 = sphi 0, %s97
    %s99 = sphi 0, %s97
    %s100 = sphi 0, %s99
    %s114 = sphi 0, %s100
    %s118 = sphi 0, %s118
    %s120 = sphi 0, %s118
    %s121 = sphi 0, %s120
    %s135 = sphi 0, %s121
    %s141 = sphi 0, %s143
    %s144 = sphi 0, %s141
    %s145 = sphi 0, %s144
    %s161 = sphi 0, %s145
  $region4: #{fuzzqe_forward.1} parent=0 // loop_header_branch
    %14 = sbr.rel (%p12) target = $region8
  $region5: #{fuzzqe_forward.1} parent=0 // loop_body
    %s16 = ssub.s32 %s11, 1
    %s17 = ssub.s32 %s11, 2
    %s18 = sadd.s32 %s11, 1
    %s19 = ssub.s32 %s11, %s18
    %p20 = scmp.eq.s32.totalorder %s19, 0
    %s22 = sadd.s32 %s21, 1
    %s23 = scalar_select %p20, %s21, %s22
    %p26 = pneg %p20
    %p27 = scmp.eq.s32.totalorder %s11, 3
    %p28 = por %p26, %p27
    %p29 = scmp.ne.s32.totalorder %s21, %s24
    %p30 = scmp.eq.s32.totalorder %s11, 0
    %p31 = por %p29, %p30
    %p32 = scmp.ne.s32.totalorder %s21, %s24
    %p33 = scmp.eq.s32.totalorder %s16, 3
    %p34 = por %p32, %p33
    %p35 = scmp.ne.s32.totalorder %s24, %s25
    %p36 = scmp.eq.s32.totalorder %s16, 0
    %p37 = por %p35, %p36
    %p38 = scmp.ne.s32.totalorder %s24, %s25
    %p39 = scmp.eq.s32.totalorder %s17, 3
    %p40 = por %p38, %p39
    %p42 = scmp.ne.s32.totalorder %s25, %s41
    %p43 = scmp.eq.s32.totalorder %s17, 0
    %p44 = por %p42, %p43
    %s45 = ssub.s32 %s11, %s18
    %p46 = scmp.eq.s32.totalorder %s45, 0
    %s48 = sadd.s32 %s47, 1
    %s49 = scalar_select %p46, %s47, %s48
    %p52 = pneg %p46
    %p53 = scmp.eq.s32.totalorder %s11, 3
    %p54 = por %p52, %p53
    %p55 = scmp.ne.s32.totalorder %s47, %s50
    %p56 = scmp.eq.s32.totalorder %s11, 0
    %p57 = por %p55, %p56
    %p58 = scmp.ne.s32.totalorder %s47, %s50
    %p59 = scmp.eq.s32.totalorder %s16, 3
    %p60 = por %p58, %p59
    %p61 = scmp.ne.s32.totalorder %s50, %s51
    %p62 = scmp.eq.s32.totalorder %s16, 0
    %p63 = por %p61, %p62
    %p64 = scmp.ne.s32.totalorder %s50, %s51
    %p65 = scmp.eq.s32.totalorder %s17, 3
    %p66 = por %p64, %p65
    %p68 = scmp.ne.s32.totalorder %s51, %s67
    %p69 = scmp.eq.s32.totalorder %s17, 0
    %p70 = por %p68, %p69
    %s71 = ssub.s32 %s11, %s18
    %p72 = scmp.eq.s32.totalorder %s71, 0
    %s74 = sadd.s32 %s73, 1
    %s75 = scalar_select %p72, %s73, %s74
    %p78 = pneg %p72
    %p79 = scmp.eq.s32.totalorder %s11, 3
    %p80 = por %p78, %p79
    %p81 = scmp.ne.s32.totalorder %s73, %s76
    %p82 = scmp.eq.s32.totalorder %s11, 0
    %p83 = por %p81, %p82
    %p84 = scmp.ne.s32.totalorder %s73, %s76
    %p85 = scmp.eq.s32.totalorder %s16, 3
    %p86 = por %p84, %p85
    %p87 = scmp.ne.s32.totalorder %s76, %s77
    %p88 = scmp.eq.s32.totalorder %s16, 0
    %p89 = por %p87, %p88
    %p90 = scmp.ne.s32.totalorder %s76, %s77
    %p91 = scmp.eq.s32.totalorder %s17, 3
    %p92 = por %p90, %p91
    %p94 = scmp.ne.s32.totalorder %s77, %s93
    %p95 = scmp.eq.s32.totalorder %s17, 0
    %p96 = por %p94, %p95
    %s98 = sadd.s32 %s97, 1
    %p101 = scmp.eq.s32.totalorder %s11, 3
    %p102 = scmp.ne.s32.totalorder %s97, %s99
    %p103 = scmp.eq.s32.totalorder %s11, 0
    %p104 = por %p102, %p103
    %p105 = scmp.ne.s32.totalorder %s97, %s99
    %p106 = scmp.eq.s32.totalorder %s16, 3
    %p107 = por %p105, %p106
    %p108 = scmp.ne.s32.totalorder %s99, %s100
    %p109 = scmp.eq.s32.totalorder %s16, 0
    %p110 = por %p108, %p109
    %p111 = scmp.ne.s32.totalorder %s99, %s100
    %p112 = scmp.eq.s32.totalorder %s17, 3
    %p113 = por %p111, %p112
    %p115 = scmp.ne.s32.totalorder %s100, %s114
    %p116 = scmp.eq.s32.totalorder %s17, 0
    %p117 = por %p115, %p116
    %s119 = sadd.s32 %s118, 1
    %p122 = scmp.eq.s32.totalorder %s11, 3
    %p123 = scmp.ne.s32.totalorder %s118, %s120
    %p124 = scmp.eq.s32.totalorder %s11, 0
    %p125 = por %p123, %p124
    %p126 = scmp.ne.s32.totalorder %s118, %s120
    %p127 = scmp.eq.s32.totalorder %s16, 3
    %p128 = por %p126, %p127
    %p129 = scmp.ne.s32.totalorder %s120, %s121
    %p130 = scmp.eq.s32.totalorder %s16, 0
    %p131 = por %p129, %p130
    %p132 = scmp.ne.s32.totalorder %s120, %s121
    %p133 = scmp.eq.s32.totalorder %s17, 3
    %p134 = por %p132, %p133
    %p136 = scmp.ne.s32.totalorder %s121, %s135
    %p137 = scmp.eq.s32.totalorder %s17, 0
    %p138 = por %p136, %p137
    %s139 = ssub.s32 %s11, %s18
    %p140 = scmp.eq.s32.totalorder %s139, 0
    %s142 = sadd.s32 %s141, 1
    %s143 = scalar_select %p140, %s141, %s142
    %p146 = pneg %p140
    %p147 = scmp.eq.s32.totalorder %s11, 3
    %p148 = por %p146, %p147
    %p149 = scmp.ne.s32.totalorder %s141, %s144
    %p150 = scmp.eq.s32.totalorder %s11, 0
    %p151 = por %p149, %p150
    %p152 = scmp.ne.s32.totalorder %s141, %s144
    %p153 = scmp.eq.s32.totalorder %s16, 3
    %p154 = por %p152, %p153
    %p155 = scmp.ne.s32.totalorder %s144, %s145
    %p156 = scmp.eq.s32.totalorder %s16, 0
    %p157 = por %p155, %p156
    %p158 = scmp.ne.s32.totalorder %s144, %s145
    %p159 = scmp.eq.s32.totalorder %s17, 3
    %p160 = por %p158, %p159
    %p162 = scmp.ne.s32.totalorder %s145, %s161
    %p163 = scmp.eq.s32.totalorder %s17, 0
    %p164 = por %p162, %p163
    %p165 = scmp.le.s32.totalorder 1, %s11
    %p166 = scmp.lt.s32.totalorder %s11, 5
    %p167 = pnand %p165, %p166
    %p168 = pneg %p167
    // Predicated region
    $region9: #{fuzzqe_forward.1} parent=5 // pred_check
      _
    $region10: #{fuzzqe_forward.1} parent=5 // pred_check_branch
      %170 = sbr.rel (%p167) target = $region12
    $region11: #{fuzzqe_forward.1} parent=5 // pred_region
      %s171 = ssub.s32 %s11, 1
      // Predicated region
      $region13: #{fuzzqe_forward.1} parent=11 // pred_check
        %p172 = pneg %p110
      $region14: #{fuzzqe_forward.1} parent=11 // pred_check_branch
        %174 = sbr.rel (%p172) target = $region16
      $region15: #{fuzzqe_forward.1} parent=11 // pred_region
        _
      $region16: #{fuzzqe_forward.1} parent=11 // pred_fallthru
        _
      // Predicated region
      $region17: #{fuzzqe_forward.1} parent=11 // pred_check
        %p175 = pneg %p131
      $region18: #{fuzzqe_forward.1} parent=11 // pred_check_branch
        %177 = sbr.rel (%p175) target = $region20
      $region19: #{fuzzqe_forward.1} parent=11 // pred_region
        _
      $region20: #{fuzzqe_forward.1} parent=11 // pred_fallthru
        _
    $region12: #{fuzzqe_forward.1} parent=5 // pred_fallthru
      _
    %p178 = scmp.lt.s32.totalorder %s11, 4
    // Predicated region
    $region21: #{fuzzqe_forward.1} parent=5 // pred_check
      %p179 = pneg %p178
    $region22: #{fuzzqe_forward.1} parent=5 // pred_check_branch
      %181 = sbr.rel (%p179) target = $region24
    $region23: #{fuzzqe_forward.1} parent=5 // pred_region
      // Predicated region
      $region25: #{fuzzqe_forward.1} parent=23 // pred_check
        %p182 = pneg %p31
      $region26: #{fuzzqe_forward.1} parent=23 // pred_check_branch
        %184 = sbr.rel (%p182) target = $region28
      $region27: #{fuzzqe_forward.1} parent=23 // pred_region
        %s185 = smul.u32 8, %s11
        %p186 = scmp.lt.s32.totalorder %s185, 31
        %s187 = scalar_select %p186, %s185, 31
        %s188 = smul.addr %s187, 8
        %s189 = scalar_lea.vmem %s0, %s188
        %s190 = smul.u32 8, %s11
      $region28: #{fuzzqe_forward.1} parent=23 // pred_fallthru
        _
      // Predicated region
      $region29: #{fuzzqe_forward.1} parent=23 // pred_check
        %p191 = pneg %p57
      $region30: #{fuzzqe_forward.1} parent=23 // pred_check_branch
        %193 = sbr.rel (%p191) target = $region32
      $region31: #{fuzzqe_forward.1} parent=23 // pred_region
        %s194 = smul.u32 8, %s11
        %p195 = scmp.lt.s32.totalorder %s194, 31
        %s196 = scalar_select %p195, %s194, 31
        %s197 = smul.addr %s196, 8
        %s198 = scalar_lea.vmem %s1, %s197
        %s199 = smul.u32 8, %s11
      $region32: #{fuzzqe_forward.1} parent=23 // pred_fallthru
        _
      // Predicated region
      $region33: #{fuzzqe_forward.1} parent=23 // pred_check
        %p200 = pneg %p83
      $region34: #{fuzzqe_forward.1} parent=23 // pred_check_branch
        %202 = sbr.rel (%p200) target = $region36
      $region35: #{fuzzqe_forward.1} parent=23 // pred_region
        %s203 = smul.u32 8, %s11
        %p204 = scmp.lt.s32.totalorder %s203, 31
        %s205 = scalar_select %p204, %s203, 31
        %s206 = smul.addr %s205, 8
        %s207 = scalar_lea.vmem %s2, %s206
        %s208 = smul.u32 8, %s11
      $region36: #{fuzzqe_forward.1} parent=23 // pred_fallthru
        _
    $region24: #{fuzzqe_forward.1} parent=5 // pred_fallthru
      _
    %p209 = scmp.le.s32.totalorder 1, %s11
    %p210 = scmp.lt.s32.totalorder %s11, 5
    %p211 = pnand %p209, %p210
    %p212 = pneg %p211
    // Predicated region
    $region37: #{fuzzqe_forward.1} parent=5 // pred_check
      _
    $region38: #{fuzzqe_forward.1} parent=5 // pred_check_branch
      %214 = sbr.rel (%p211) target = $region40
    $region39: #{fuzzqe_forward.1} parent=5 // pred_region
      %s215 = ssub.s32 %s11, 1
      %s216 = smul.u32 8, %s16
      %p217 = scmp.lt.s32.totalorder %s216, 31
      %s218 = scalar_select %p217, %s216, 31
      %s219 = smul.addr %s218, 8
      %s220 = scalar_lea.vmem %s0, %s219
      %p221 = pneg %p37
      %p222 = pneg %p34
      %s223 = smul.u32 8, %s16
      %p224 = scmp.lt.s32.totalorder %s223, 31
      %s225 = scalar_select %p224, %s223, 31
      %s226 = smul.addr %s225, 8
      %s227 = scalar_lea.vmem %s1, %s226
      %p228 = pneg %p63
      %p229 = pneg %p60
      %s230 = smul.u32 8, %s16
      %p231 = scmp.lt.s32.totalorder %s230, 31
      %s232 = scalar_select %p231, %s230, 31
      %s233 = smul.addr %s232, 8
      %s234 = scalar_lea.vmem %s2, %s233
      %p235 = pneg %p89
      %p236 = pneg %p86
      %p237 = pneg %p110
      %p238 = pneg %p107
      %p239 = pneg %p131
      %p240 = pneg %p128
      %p241 = pneg %p157
      %p242 = pneg %p154
      %s243 = smul.u32 8, %s16
      %p244 = scmp.lt.s32.totalorder %s243, 31
      %s245 = scalar_select %p244, %s243, 31
      %s246 = smul.addr %s245, 8
      %s247 = scalar_lea.vmem %s5, %s246
      %s248 = smul.u32 8, %s16
      %p249 = scmp.lt.s32.totalorder %s248, 31
      %s250 = scalar_select %p249, %s248, 31
      %s251 = smul.addr %s250, 8
      %s252 = scalar_lea.vmem %s0, %s251
      %s253 = smul.u32 8, %s16
      %s254 = smul.u32 8, %s16
      %p255 = scmp.lt.s32.totalorder %s254, 31
      %s256 = scalar_select %p255, %s254, 31
      %s257 = smul.addr %s256, 8
      %s258 = scalar_lea.vmem %s1, %s257
      %s259 = smul.u32 8, %s16
      %s260 = smul.u32 8, %s16
      %p261 = scmp.lt.s32.totalorder %s260, 31
      %s262 = scalar_select %p261, %s260, 31
      %s263 = smul.addr %s262, 8
      %s264 = scalar_lea.vmem %s2, %s263
      %s265 = smul.u32 8, %s16
      %s266 = smul.u32 8, %s16
      %p267 = scmp.lt.s32.totalorder %s266, 31
      %s268 = scalar_select %p267, %s266, 31
      %s269 = smul.addr %s268, 8
      %s270 = scalar_lea.vmem %s5, %s269
      %s271 = smul.u32 8, %s16
      %v272 = vlaneseq
      %v273 = vand.u32 %v272, 127
      %vm274 = vcmp.eq.s32.totalorder %v273, 0
      %v275 = vsel %vm274, 1.0, 0.0
      %v276 = vld [vmem:[%s252] sm:$0xff]
      %v277 = vld [vmem:[%s252 + $0x8] sm:$0xff]
      %v278 = vld [vmem:[%s252 + $0x10] sm:$0xff]
      %v279 = vld [vmem:[%s252 + $0x18] sm:$0xff]
      %v280 = vld [vmem:[%s252 + $0x20] sm:$0xff]
      %v281 = vld [vmem:[%s252 + $0x28] sm:$0xff]
      %v282 = vld [vmem:[%s252 + $0x30] sm:$0xff]
      %v283 = vld [vmem:[%s252 + $0x38] sm:$0xff]
      %v284 = vld [vmem:[%s258] sm:$0xff]
      %v285 = vld [vmem:[%s258 + $0x8] sm:$0xff]
      %v286 = vld [vmem:[%s258 + $0x10] sm:$0xff]
      %v287 = vld [vmem:[%s258 + $0x18] sm:$0xff]
      %v288 = vld [vmem:[%s258 + $0x20] sm:$0xff]
      %v289 = vld [vmem:[%s258 + $0x28] sm:$0xff]
      %v290 = vld [vmem:[%s258 + $0x30] sm:$0xff]
      %v291 = vld [vmem:[%s258 + $0x38] sm:$0xff]
      %v292 = vld [vmem:[%s264] sm:$0xff]
      %v293 = vld [vmem:[%s264 + $0x8] sm:$0xff]
      %v294 = vld [vmem:[%s264 + $0x10] sm:$0xff]
      %v295 = vld [vmem:[%s264 + $0x18] sm:$0xff]
      %v296 = vld [vmem:[%s264 + $0x20] sm:$0xff]
      %v297 = vld [vmem:[%s264 + $0x28] sm:$0xff]
      %v298 = vld [vmem:[%s264 + $0x30] sm:$0xff]
      %v299 = vld [vmem:[%s264 + $0x38] sm:$0xff]
      %308 = vrot.lane.b32.xlu0 %v284, 32
      %v309 = vpop.permute.xlu0 %308
      %310 = vrot.lane.b32.xlu0 %v285, 32
      %v311 = vpop.permute.xlu0 %310
      %312 = vrot.lane.b32.xlu0 %v286, 32
      %v313 = vpop.permute.xlu0 %312
      %314 = vrot.lane.b32.xlu0 %v287, 32
      %v315 = vpop.permute.xlu0 %314
      %316 = vrot.lane.b32.xlu0 %v288, 32
      %v317 = vpop.permute.xlu0 %316
      %318 = vrot.lane.b32.xlu0 %v289, 32
      %v319 = vpop.permute.xlu0 %318
      %320 = vrot.lane.b32.xlu0 %v290, 32
      %v321 = vpop.permute.xlu0 %320
      %322 = vrot.lane.b32.xlu0 %v291, 32
      %v323 = vpop.permute.xlu0 %322
      %340 = vrot.lane.b32.xlu0 %v292, 64
      %v341 = vpop.permute.xlu0 %340
      %342 = vrot.lane.b32.xlu0 %v293, 64
      %v343 = vpop.permute.xlu0 %342
      %344 = vrot.lane.b32.xlu0 %v294, 64
      %v345 = vpop.permute.xlu0 %344
      %346 = vrot.lane.b32.xlu0 %v295, 64
      %v347 = vpop.permute.xlu0 %346
      %348 = vrot.lane.b32.xlu0 %v296, 64
      %v349 = vpop.permute.xlu0 %348
      %350 = vrot.lane.b32.xlu0 %v297, 64
      %v351 = vpop.permute.xlu0 %350
      %352 = vrot.lane.b32.xlu0 %v298, 64
      %v353 = vpop.permute.xlu0 %352
      %354 = vrot.lane.b32.xlu0 %v299, 64
      %v355 = vpop.permute.xlu0 %354
      %365 = vrot.lane.b32.xlu0 %v275, 96
      %v366 = vpop.permute.xlu0 %365
      %vm368 = vcmask 261120
      %v369 = vsel %vm368, %v276, %v309
      %v370 = vsel %vm368, %v277, %v311
      %v371 = vsel %vm368, %v278, %v313
      %v372 = vsel %vm368, %v279, %v315
      %v373 = vsel %vm368, %v280, %v317
      %v374 = vsel %vm368, %v281, %v319
      %v375 = vsel %vm368, %v282, %v321
      %v376 = vsel %vm368, %v283, %v323
      %vm377 = vcmask 523264
      %v378 = vsel %vm377, %v369, %v341
      %v379 = vsel %vm377, %v370, %v343
      %v380 = vsel %vm377, %v371, %v345
      %v381 = vsel %vm377, %v372, %v347
      %v382 = vsel %vm377, %v373, %v349
      %v383 = vsel %vm377, %v374, %v351
      %v384 = vsel %vm377, %v375, %v353
      %v385 = vsel %vm377, %v376, %v355
      %vm386 = vcmask 785408
      %v387 = vsel %vm386, %v378, %v366
      %v388 = vsel %vm386, %v379, %v366
      %v389 = vsel %vm386, %v380, %v366
      %v390 = vsel %vm386, %v381, %v366
      %v391 = vsel %vm386, %v382, %v366
      %v392 = vsel %vm386, %v383, %v366
      %v393 = vsel %vm386, %v384, %v366
      %v394 = vsel %vm386, %v385, %v366
      %v395 = vld [vmem:[%s3] sm:$0xf]
      %v396 = vld [vmem:[%s3 + $0x4] sm:$0xf]
      %v397 = vld [vmem:[%s3 + $0x8] sm:$0xf]
      %v398 = vld [vmem:[%s3 + $0xc] sm:$0xf]
      %v399 = vld [vmem:[%s3 + $0x10] sm:$0xf]
      %v400 = vld [vmem:[%s3 + $0x14] sm:$0xf]
      %v401 = vld [vmem:[%s3 + $0x18] sm:$0xf]
      %v402 = vld [vmem:[%s3 + $0x1c] sm:$0xf]
      %v403 = vld [vmem:[%s3 + $0x20] sm:$0xf]
      %v404 = vld [vmem:[%s3 + $0x24] sm:$0xf]
      %v405 = vld [vmem:[%s3 + $0x28] sm:$0xf]
      %v406 = vld [vmem:[%s3 + $0x2c] sm:$0xf]
      %v407 = vld [vmem:[%s3 + $0x30] sm:$0xf]
      %v408 = vld [vmem:[%s3 + $0x34] sm:$0xf]
      %v409 = vld [vmem:[%s3 + $0x38] sm:$0xf]
      %v410 = vld [vmem:[%s3 + $0x3c] sm:$0xf]
      %v411 = vld [vmem:[%s3 + $0x40] sm:$0xf]
      %v412 = vld [vmem:[%s3 + $0x44] sm:$0xf]
      %v413 = vld [vmem:[%s3 + $0x48] sm:$0xf]
      %v414 = vld [vmem:[%s3 + $0x4c] sm:$0xf]
      %v415 = vld [vmem:[%s3 + $0x50] sm:$0xf]
      %v416 = vld [vmem:[%s3 + $0x54] sm:$0xf]
      %v417 = vld [vmem:[%s3 + $0x58] sm:$0xf]
      %v418 = vld [vmem:[%s3 + $0x5c] sm:$0xf]
      %v419 = vld [vmem:[%s3 + $0x60] sm:$0xf]
      %v420 = vld [vmem:[%s3 + $0x64] sm:$0xf]
      %v421 = vld [vmem:[%s3 + $0x68] sm:$0xf]
      %v422 = vld [vmem:[%s3 + $0x6c] sm:$0xf]
      %v423 = vld [vmem:[%s3 + $0x70] sm:$0xf]
      %v424 = vld [vmem:[%s3 + $0x74] sm:$0xf]
      %v425 = vld [vmem:[%s3 + $0x78] sm:$0xf]
      %v426 = vld [vmem:[%s3 + $0x7c] sm:$0xf]
      %v427 = vld [vmem:[%s3 + $0x80] sm:$0xf]
      %v428 = vld [vmem:[%s3 + $0x84] sm:$0xf]
      %v429 = vld [vmem:[%s3 + $0x88] sm:$0xf]
      %v430 = vld [vmem:[%s3 + $0x8c] sm:$0xf]
      %v431 = vld [vmem:[%s3 + $0x90] sm:$0xf]
      %v432 = vld [vmem:[%s3 + $0x94] sm:$0xf]
      %v433 = vld [vmem:[%s3 + $0x98] sm:$0xf]
      %v434 = vld [vmem:[%s3 + $0x9c] sm:$0xf]
      %v435 = vld [vmem:[%s3 + $0xa0] sm:$0xf]
      %v436 = vld [vmem:[%s3 + $0xa4] sm:$0xf]
      %v437 = vld [vmem:[%s3 + $0xa8] sm:$0xf]
      %v438 = vld [vmem:[%s3 + $0xac] sm:$0xf]
      %v439 = vld [vmem:[%s3 + $0xb0] sm:$0xf]
      %v440 = vld [vmem:[%s3 + $0xb4] sm:$0xf]
      %v441 = vld [vmem:[%s3 + $0xb8] sm:$0xf]
      %v442 = vld [vmem:[%s3 + $0xbc] sm:$0xf]
      %v443 = vpack.c.bf16 %v388, %v387
      %v444 = vpack.c.bf16 %v390, %v389
      %v445 = vpack.c.bf16 %v392, %v391
      %v446 = vpack.c.bf16 %v394, %v393
      %v463 = vunpack.c.l.b16 %v395
      %v464 = vunpack.c.l.b16 %v396
      %v465 = vunpack.c.l.b16 %v397
      %v466 = vunpack.c.l.b16 %v398
      %v467 = vunpack.c.l.b16 %v399
      %v468 = vunpack.c.l.b16 %v400
      %v469 = vunpack.c.l.b16 %v401
      %v470 = vunpack.c.l.b16 %v402
      %v471 = vunpack.c.l.b16 %v403
      %v472 = vunpack.c.l.b16 %v404
      %v473 = vunpack.c.l.b16 %v405
      %v474 = vunpack.c.l.b16 %v406
      %v475 = vunpack.c.l.b16 %v407
      %v476 = vunpack.c.l.b16 %v408
      %v477 = vunpack.c.l.b16 %v409
      %v478 = vunpack.c.l.b16 %v410
      %v479 = vpack.c.b16 %v464, %v463
      %v480 = vpack.c.b16 %v466, %v465
      %v481 = vpack.c.b16 %v468, %v467
      %v482 = vpack.c.b16 %v470, %v469
      %v483 = vpack.c.b16 %v472, %v471
      %v484 = vpack.c.b16 %v474, %v473
      %v485 = vpack.c.b16 %v476, %v475
      %v486 = vpack.c.b16 %v478, %v477
      %495 = vmatpush.bf16.msra.mxu0 %v486
      %496 = vmatpush.bf16.msra.mxu0 %v485
      %497 = vmatpush.bf16.msra.mxu0 %v484
      %498 = vmatpush.bf16.msra.mxu0 %v483
      %499 = vmatpush.bf16.msra.mxu0 %v482
      %500 = vmatpush.bf16.msra.mxu0 %v481
      %501 = vmatpush.bf16.msra.mxu0 %v480
      %502 = vmatpush.bf16.msra.mxu0 %v479
      %503 = vmatmul.bf16.gmra.mxu0 %v443
      %v504 = vpop.f32.mrf.mxu0
      %v505 = vadd.f32 0.0, %v504
      %v506 = vpop.f32.mrf.mxu0
      %v507 = vadd.f32 0.0, %v506
      %508 = vmatmul.bf16.gmra.mxu0 %v444
      %v509 = vpop.f32.mrf.mxu0
      %v510 = vadd.f32 0.0, %v509
      %v511 = vpop.f32.mrf.mxu0
      %v512 = vadd.f32 0.0, %v511
      %513 = vmatmul.bf16.gmra.mxu0 %v445
      %v514 = vpop.f32.mrf.mxu0
      %v515 = vadd.f32 0.0, %v514
      %v516 = vpop.f32.mrf.mxu0
      %v517 = vadd.f32 0.0, %v516
      %518 = vmatmul.bf16.gmra.mxu0 %v446
      %v519 = vpop.f32.mrf.mxu0
      %v520 = vadd.f32 0.0, %v519
      %v521 = vpop.f32.mrf.mxu0
      %v522 = vadd.f32 0.0, %v521
      %523 = vdwg.mxu0
      %v524 = vmax.f32 %v505, 0.0
      %v525 = vmax.f32 %v507, 0.0
      %v526 = vmax.f32 %v510, 0.0
      %v527 = vmax.f32 %v512, 0.0
      %v528 = vmax.f32 %v515, 0.0
      %v529 = vmax.f32 %v517, 0.0
      %v530 = vmax.f32 %v520, 0.0
      %v531 = vmax.f32 %v522, 0.0
      %v532 = vpack.c.bf16 %v525, %v524
      %v533 = vpack.c.bf16 %v527, %v526
      %v534 = vpack.c.bf16 %v529, %v528
      %v535 = vpack.c.bf16 %v531, %v530
      %v552 = vunpack.c.l.b16 %v411
      %v553 = vunpack.c.l.b16 %v412
      %v554 = vunpack.c.l.b16 %v413
      %v555 = vunpack.c.l.b16 %v414
      %v556 = vunpack.c.l.b16 %v415
      %v557 = vunpack.c.l.b16 %v416
      %v558 = vunpack.c.l.b16 %v417
      %v559 = vunpack.c.l.b16 %v418
      %v560 = vunpack.c.l.b16 %v419
      %v561 = vunpack.c.l.b16 %v420
      %v562 = vunpack.c.l.b16 %v421
      %v563 = vunpack.c.l.b16 %v422
      %v564 = vunpack.c.l.b16 %v423
      %v565 = vunpack.c.l.b16 %v424
      %v566 = vunpack.c.l.b16 %v425
      %v567 = vunpack.c.l.b16 %v426
      %v568 = vpack.c.b16 %v553, %v552
      %v569 = vpack.c.b16 %v555, %v554
      %v570 = vpack.c.b16 %v557, %v556
      %v571 = vpack.c.b16 %v559, %v558
      %v572 = vpack.c.b16 %v561, %v560
      %v573 = vpack.c.b16 %v563, %v562
      %v574 = vpack.c.b16 %v565, %v564
      %v575 = vpack.c.b16 %v567, %v566
      %584 = vmatpush.bf16.msra.mxu0 %v575
      %585 = vmatpush.bf16.msra.mxu0 %v574
      %586 = vmatpush.bf16.msra.mxu0 %v573
      %587 = vmatpush.bf16.msra.mxu0 %v572
      %588 = vmatpush.bf16.msra.mxu0 %v571
      %589 = vmatpush.bf16.msra.mxu0 %v570
      %590 = vmatpush.bf16.msra.mxu0 %v569
      %591 = vmatpush.bf16.msra.mxu0 %v568
      %592 = vmatmul.bf16.gmra.mxu0 %v532
      %v593 = vpop.f32.mrf.mxu0
      %v594 = vadd.f32 0.0, %v593
      %v595 = vpop.f32.mrf.mxu0
      %v596 = vadd.f32 0.0, %v595
      %597 = vmatmul.bf16.gmra.mxu0 %v533
      %v598 = vpop.f32.mrf.mxu0
      %v599 = vadd.f32 0.0, %v598
      %v600 = vpop.f32.mrf.mxu0
      %v601 = vadd.f32 0.0, %v600
      %602 = vmatmul.bf16.gmra.mxu0 %v534
      %v603 = vpop.f32.mrf.mxu0
      %v604 = vadd.f32 0.0, %v603
      %v605 = vpop.f32.mrf.mxu0
      %v606 = vadd.f32 0.0, %v605
      %607 = vmatmul.bf16.gmra.mxu0 %v535
      %v608 = vpop.f32.mrf.mxu0
      %v609 = vadd.f32 0.0, %v608
      %v610 = vpop.f32.mrf.mxu0
      %v611 = vadd.f32 0.0, %v610
      %612 = vdwg.mxu0
      %v613 = vmax.f32 %v594, 0.0
      %v614 = vmax.f32 %v596, 0.0
      %v615 = vmax.f32 %v599, 0.0
      %v616 = vmax.f32 %v601, 0.0
      %v617 = vmax.f32 %v604, 0.0
      %v618 = vmax.f32 %v606, 0.0
      %v619 = vmax.f32 %v609, 0.0
      %v620 = vmax.f32 %v611, 0.0
      %v621 = vpack.c.bf16 %v614, %v613
      %v622 = vpack.c.bf16 %v616, %v615
      %v623 = vpack.c.bf16 %v618, %v617
      %v624 = vpack.c.bf16 %v620, %v619
      %v641 = vunpack.c.l.b16 %v427
      %v642 = vunpack.c.l.b16 %v428
      %v643 = vunpack.c.l.b16 %v429
      %v644 = vunpack.c.l.b16 %v430
      %v645 = vunpack.c.l.b16 %v431
      %v646 = vunpack.c.l.b16 %v432
      %v647 = vunpack.c.l.b16 %v433
      %v648 = vunpack.c.l.b16 %v434
      %v649 = vunpack.c.l.b16 %v435
      %v650 = vunpack.c.l.b16 %v436
      %v651 = vunpack.c.l.b16 %v437
      %v652 = vunpack.c.l.b16 %v438
      %v653 = vunpack.c.l.b16 %v439
      %v654 = vunpack.c.l.b16 %v440
      %v655 = vunpack.c.l.b16 %v441
      %v656 = vunpack.c.l.b16 %v442
      %v657 = vpack.c.b16 %v642, %v641
      %v658 = vpack.c.b16 %v644, %v643
      %v659 = vpack.c.b16 %v646, %v645
      %v660 = vpack.c.b16 %v648, %v647
      %v661 = vpack.c.b16 %v650, %v649
      %v662 = vpack.c.b16 %v652, %v651
      %v663 = vpack.c.b16 %v654, %v653
      %v664 = vpack.c.b16 %v656, %v655
      %673 = vmatpush.bf16.msra.mxu0 %v664
      %674 = vmatpush.bf16.msra.mxu0 %v663
      %675 = vmatpush.bf16.msra.mxu0 %v662
      %676 = vmatpush.bf16.msra.mxu0 %v661
      %677 = vmatpush.bf16.msra.mxu0 %v660
      %678 = vmatpush.bf16.msra.mxu0 %v659
      %679 = vmatpush.bf16.msra.mxu0 %v658
      %680 = vmatpush.bf16.msra.mxu0 %v657
      %681 = vmatmul.bf16.gmra.mxu0 %v621
      %v682 = vpop.f32.mrf.mxu0
      %v683 = vadd.f32 0.0, %v682
      %v684 = vpop.f32.mrf.mxu0
      %v685 = vadd.f32 0.0, %v684
      %686 = vmatmul.bf16.gmra.mxu0 %v622
      %v687 = vpop.f32.mrf.mxu0
      %v688 = vadd.f32 0.0, %v687
      %v689 = vpop.f32.mrf.mxu0
      %v690 = vadd.f32 0.0, %v689
      %691 = vmatmul.bf16.gmra.mxu0 %v623
      %v692 = vpop.f32.mrf.mxu0
      %v693 = vadd.f32 0.0, %v692
      %v694 = vpop.f32.mrf.mxu0
      %v695 = vadd.f32 0.0, %v694
      %696 = vmatmul.bf16.gmra.mxu0 %v624
      %v697 = vpop.f32.mrf.mxu0
      %v698 = vadd.f32 0.0, %v697
      %v699 = vpop.f32.mrf.mxu0
      %v700 = vadd.f32 0.0, %v699
      %701 = vdwg.mxu0
      %v702 = vand.u32 2147483647, %v683
      %v703 = vand.u32 2147483647, %v685
      %v704 = vand.u32 2147483647, %v688
      %v705 = vand.u32 2147483647, %v690
      %v706 = vand.u32 2147483647, %v693
      %v707 = vand.u32 2147483647, %v695
      %v708 = vand.u32 2147483647, %v698
      %v709 = vand.u32 2147483647, %v700
      %v710 = vsub.f32 0.0, %v702
      %v711 = vsub.f32 0.0, %v703
      %v712 = vsub.f32 0.0, %v704
      %v713 = vsub.f32 0.0, %v705
      %v714 = vsub.f32 0.0, %v706
      %v715 = vsub.f32 0.0, %v707
      %v716 = vsub.f32 0.0, %v708
      %v717 = vsub.f32 0.0, %v709
      %v718 = vmul.f32 %v710, 1.442695
      %v719 = vpow.pop %v718
      %v720 = vmul.f32 %v711, 1.442695
      %v721 = vpow.pop %v720
      %v722 = vmul.f32 %v712, 1.442695
      %v723 = vpow.pop %v722
      %v724 = vmul.f32 %v713, 1.442695
      %v725 = vpow.pop %v724
      %v726 = vmul.f32 %v714, 1.442695
      %v727 = vpow.pop %v726
      %v728 = vmul.f32 %v715, 1.442695
      %v729 = vpow.pop %v728
      %v730 = vmul.f32 %v716, 1.442695
      %v731 = vpow.pop %v730
      %v732 = vmul.f32 %v717, 1.442695
      %v733 = vpow.pop %v732
      %v734 = vadd.f32 %v719, 1.0
      %v735 = vadd.f32 %v721, 1.0
      %v736 = vadd.f32 %v723, 1.0
      %v737 = vadd.f32 %v725, 1.0
      %v738 = vadd.f32 %v727, 1.0
      %v739 = vadd.f32 %v729, 1.0
      %v740 = vadd.f32 %v731, 1.0
      %v741 = vadd.f32 %v733, 1.0
      %v742 = vrcp.pop %v734
      %v743 = vrcp.pop %v735
      %v744 = vrcp.pop %v736
      %v745 = vrcp.pop %v737
      %v746 = vrcp.pop %v738
      %v747 = vrcp.pop %v739
      %v748 = vrcp.pop %v740
      %v749 = vrcp.pop %v741
      %vm750 = vcmp.ge.f32.partialorder %v683, 0.0
      %vm751 = vcmp.ge.f32.partialorder %v685, 0.0
      %vm752 = vcmp.ge.f32.partialorder %v688, 0.0
      %vm753 = vcmp.ge.f32.partialorder %v690, 0.0
      %vm754 = vcmp.ge.f32.partialorder %v693, 0.0
      %vm755 = vcmp.ge.f32.partialorder %v695, 0.0
      %vm756 = vcmp.ge.f32.partialorder %v698, 0.0
      %vm757 = vcmp.ge.f32.partialorder %v700, 0.0
      %v758 = vmul.f32 %v719, %v742
      %v759 = vmul.f32 %v721, %v743
      %v760 = vmul.f32 %v723, %v744
      %v761 = vmul.f32 %v725, %v745
      %v762 = vmul.f32 %v727, %v746
      %v763 = vmul.f32 %v729, %v747
      %v764 = vmul.f32 %v731, %v748
      %v765 = vmul.f32 %v733, %v749
      %v766 = vsel %vm750, %v742, %v758
      %v767 = vsel %vm751, %v743, %v759
      %v768 = vsel %vm752, %v744, %v760
      %v769 = vsel %vm753, %v745, %v761
      %v770 = vsel %vm754, %v746, %v762
      %v771 = vsel %vm755, %v747, %v763
      %v772 = vsel %vm756, %v748, %v764
      %v773 = vsel %vm757, %v749, %v765
      %v774 = vld [vmem:[%s4] sm:$0x1]
      %v775 = vand.u32 2147483647, %v774
      %v776 = vsub.f32 0.0, %v775
      %v777 = vmul.f32 %v776, 1.442695
      %v778 = vpow.pop %v777
      %v779 = vadd.f32 %v778, 1.0
      %v780 = vrcp.pop %v779
      %vm781 = vcmp.ge.f32.partialorder %v774, 0.0
      %v782 = vmul.f32 %v778, %v780
      %v783 = vsel %vm781, %v780, %v782
      %v785 = vperm.slane %v783, 0
      %786 = vrot.lane.b32.xlu0 %v785, 64
      %v787 = vpop.permute.xlu0 %786
      %v789 = vmul.f32 %v766, %v787
      %v790 = vmul.f32 %v767, %v787
      %v791 = vmul.f32 %v768, %v787
      %v792 = vmul.f32 %v769, %v787
      %v793 = vmul.f32 %v770, %v787
      %v794 = vmul.f32 %v771, %v787
      %v795 = vmul.f32 %v772, %v787
      %v796 = vmul.f32 %v773, %v787
      %805 = vrot.lane.b32.xlu0 %v766, 64
      %v806 = vpop.permute.xlu0 %805
      %807 = vrot.lane.b32.xlu0 %v767, 64
      %v808 = vpop.permute.xlu0 %807
      %809 = vrot.lane.b32.xlu0 %v768, 64
      %v810 = vpop.permute.xlu0 %809
      %811 = vrot.lane.b32.xlu0 %v769, 64
      %v812 = vpop.permute.xlu0 %811
      %813 = vrot.lane.b32.xlu0 %v770, 64
      %v814 = vpop.permute.xlu0 %813
      %815 = vrot.lane.b32.xlu0 %v771, 64
      %v816 = vpop.permute.xlu0 %815
      %817 = vrot.lane.b32.xlu0 %v772, 64
      %v818 = vpop.permute.xlu0 %817
      %819 = vrot.lane.b32.xlu0 %v773, 64
      %v820 = vpop.permute.xlu0 %819
      %v829 = vmul.f32 %v789, %v806
      %v830 = vmul.f32 %v790, %v808
      %v831 = vmul.f32 %v791, %v810
      %v832 = vmul.f32 %v792, %v812
      %v833 = vmul.f32 %v793, %v814
      %v834 = vmul.f32 %v794, %v816
      %v835 = vmul.f32 %v795, %v818
      %v836 = vmul.f32 %v796, %v820
      %845 = vrot.lane.b32.xlu0 %v829, 64
      %v846 = vpop.permute.xlu0 %845
      %847 = vrot.lane.b32.xlu0 %v830, 64
      %v848 = vpop.permute.xlu0 %847
      %849 = vrot.lane.b32.xlu0 %v831, 64
      %v850 = vpop.permute.xlu0 %849
      %851 = vrot.lane.b32.xlu0 %v832, 64
      %v852 = vpop.permute.xlu0 %851
      %853 = vrot.lane.b32.xlu0 %v833, 64
      %v854 = vpop.permute.xlu0 %853
      %855 = vrot.lane.b32.xlu0 %v834, 64
      %v856 = vpop.permute.xlu0 %855
      %857 = vrot.lane.b32.xlu0 %v835, 64
      %v858 = vpop.permute.xlu0 %857
      %859 = vrot.lane.b32.xlu0 %v836, 64
      %v860 = vpop.permute.xlu0 %859
      %v869 = vsel %vm368, %v846, 0.0
      %870 = vadd.xlane.f32.xlu0 %v869
      %v871 = vpop.xlane.xlu0 %870
      %v872 = vsel %vm368, %v848, 0.0
      %873 = vadd.xlane.f32.xlu0 %v872
      %v874 = vpop.xlane.xlu0 %873
      %v875 = vsel %vm368, %v850, 0.0
      %876 = vadd.xlane.f32.xlu0 %v875
      %v877 = vpop.xlane.xlu0 %876
      %v878 = vsel %vm368, %v852, 0.0
      %879 = vadd.xlane.f32.xlu0 %v878
      %v880 = vpop.xlane.xlu0 %879
      %v881 = vsel %vm368, %v854, 0.0
      %882 = vadd.xlane.f32.xlu0 %v881
      %v883 = vpop.xlane.xlu0 %882
      %v884 = vsel %vm368, %v856, 0.0
      %885 = vadd.xlane.f32.xlu0 %v884
      %v886 = vpop.xlane.xlu0 %885
      %v887 = vsel %vm368, %v858, 0.0
      %888 = vadd.xlane.f32.xlu0 %v887
      %v889 = vpop.xlane.xlu0 %888
      %v890 = vsel %vm368, %v860, 0.0
      %891 = vadd.xlane.f32.xlu0 %v890
      %v892 = vpop.xlane.xlu0 %891
      %893 = vrot.lane.b32.xlu0 %v766, 32
      %v894 = vpop.permute.xlu0 %893
      %895 = vrot.lane.b32.xlu0 %v767, 32
      %v896 = vpop.permute.xlu0 %895
      %897 = vrot.lane.b32.xlu0 %v768, 32
      %v898 = vpop.permute.xlu0 %897
      %899 = vrot.lane.b32.xlu0 %v769, 32
      %v900 = vpop.permute.xlu0 %899
      %901 = vrot.lane.b32.xlu0 %v770, 32
      %v902 = vpop.permute.xlu0 %901
      %903 = vrot.lane.b32.xlu0 %v771, 32
      %v904 = vpop.permute.xlu0 %903
      %905 = vrot.lane.b32.xlu0 %v772, 32
      %v906 = vpop.permute.xlu0 %905
      %907 = vrot.lane.b32.xlu0 %v773, 32
      %v908 = vpop.permute.xlu0 %907
      %v917 = vmul.f32 %v789, %v894
      %v918 = vmul.f32 %v790, %v896
      %v919 = vmul.f32 %v791, %v898
      %v920 = vmul.f32 %v792, %v900
      %v921 = vmul.f32 %v793, %v902
      %v922 = vmul.f32 %v794, %v904
      %v923 = vmul.f32 %v795, %v906
      %v924 = vmul.f32 %v796, %v908
      %933 = vrot.lane.b32.xlu0 %v917, 64
      %v934 = vpop.permute.xlu0 %933
      %935 = vrot.lane.b32.xlu0 %v918, 64
      %v936 = vpop.permute.xlu0 %935
      %937 = vrot.lane.b32.xlu0 %v919, 64
      %v938 = vpop.permute.xlu0 %937
      %939 = vrot.lane.b32.xlu0 %v920, 64
      %v940 = vpop.permute.xlu0 %939
      %941 = vrot.lane.b32.xlu0 %v921, 64
      %v942 = vpop.permute.xlu0 %941
      %943 = vrot.lane.b32.xlu0 %v922, 64
      %v944 = vpop.permute.xlu0 %943
      %945 = vrot.lane.b32.xlu0 %v923, 64
      %v946 = vpop.permute.xlu0 %945
      %947 = vrot.lane.b32.xlu0 %v924, 64
      %v948 = vpop.permute.xlu0 %947
      %v957 = vsel %vm368, %v934, 0.0
      %958 = vadd.xlane.f32.xlu0 %v957
      %v959 = vpop.xlane.xlu0 %958
      %v960 = vsel %vm368, %v936, 0.0
      %961 = vadd.xlane.f32.xlu0 %v960
      %v962 = vpop.xlane.xlu0 %961
      %v963 = vsel %vm368, %v938, 0.0
      %964 = vadd.xlane.f32.xlu0 %v963
      %v965 = vpop.xlane.xlu0 %964
      %v966 = vsel %vm368, %v940, 0.0
      %967 = vadd.xlane.f32.xlu0 %v966
      %v968 = vpop.xlane.xlu0 %967
      %v969 = vsel %vm368, %v942, 0.0
      %970 = vadd.xlane.f32.xlu0 %v969
      %v971 = vpop.xlane.xlu0 %970
      %v972 = vsel %vm368, %v944, 0.0
      %973 = vadd.xlane.f32.xlu0 %v972
      %v974 = vpop.xlane.xlu0 %973
      %v975 = vsel %vm368, %v946, 0.0
      %976 = vadd.xlane.f32.xlu0 %v975
      %v977 = vpop.xlane.xlu0 %976
      %v978 = vsel %vm368, %v948, 0.0
      %979 = vadd.xlane.f32.xlu0 %v978
      %v980 = vpop.xlane.xlu0 %979
      %989 = vrot.lane.b32.xlu0 %v789, 64
      %v990 = vpop.permute.xlu0 %989
      %991 = vrot.lane.b32.xlu0 %v790, 64
      %v992 = vpop.permute.xlu0 %991
      %993 = vrot.lane.b32.xlu0 %v791, 64
      %v994 = vpop.permute.xlu0 %993
      %995 = vrot.lane.b32.xlu0 %v792, 64
      %v996 = vpop.permute.xlu0 %995
      %997 = vrot.lane.b32.xlu0 %v793, 64
      %v998 = vpop.permute.xlu0 %997
      %999 = vrot.lane.b32.xlu0 %v794, 64
      %v1000 = vpop.permute.xlu0 %999
      %1001 = vrot.lane.b32.xlu0 %v795, 64
      %v1002 = vpop.permute.xlu0 %1001
      %1003 = vrot.lane.b32.xlu0 %v796, 64
      %v1004 = vpop.permute.xlu0 %1003
      %v1013 = vsel %vm368, %v990, 0.0
      %1014 = vadd.xlane.f32.xlu0 %v1013
      %v1015 = vpop.xlane.xlu0 %1014
      %v1016 = vsel %vm368, %v992, 0.0
      %1017 = vadd.xlane.f32.xlu0 %v1016
      %v1018 = vpop.xlane.xlu0 %1017
      %v1019 = vsel %vm368, %v994, 0.0
      %1020 = vadd.xlane.f32.xlu0 %v1019
      %v1021 = vpop.xlane.xlu0 %1020
      %v1022 = vsel %vm368, %v996, 0.0
      %1023 = vadd.xlane.f32.xlu0 %v1022
      %v1024 = vpop.xlane.xlu0 %1023
      %v1025 = vsel %vm368, %v998, 0.0
      %1026 = vadd.xlane.f32.xlu0 %v1025
      %v1027 = vpop.xlane.xlu0 %1026
      %v1028 = vsel %vm368, %v1000, 0.0
      %1029 = vadd.xlane.f32.xlu0 %v1028
      %v1030 = vpop.xlane.xlu0 %1029
      %v1031 = vsel %vm368, %v1002, 0.0
      %1032 = vadd.xlane.f32.xlu0 %v1031
      %v1033 = vpop.xlane.xlu0 %1032
      %v1034 = vsel %vm368, %v1004, 0.0
      %1035 = vadd.xlane.f32.xlu0 %v1034
      %v1036 = vpop.xlane.xlu0 %1035
      %v1037 = vsub.f32 %v871, 0.1
      %v1038 = vsub.f32 %v874, 0.1
      %v1039 = vsub.f32 %v877, 0.1
      %v1040 = vsub.f32 %v880, 0.1
      %v1041 = vsub.f32 %v883, 0.1
      %v1042 = vsub.f32 %v886, 0.1
      %v1043 = vsub.f32 %v889, 0.1
      %v1044 = vsub.f32 %v892, 0.1
      %v1045 = vsub.f32 %v1037, %v959
      %v1046 = vsub.f32 %v1038, %v962
      %v1047 = vsub.f32 %v1039, %v965
      %v1048 = vsub.f32 %v1040, %v968
      %v1049 = vsub.f32 %v1041, %v971
      %v1050 = vsub.f32 %v1042, %v974
      %v1051 = vsub.f32 %v1043, %v977
      %v1052 = vsub.f32 %v1044, %v980
      %v1053 = vmul.f32 %v1045, 10.0
      %v1054 = vmul.f32 %v1046, 10.0
      %v1055 = vmul.f32 %v1047, 10.0
      %v1056 = vmul.f32 %v1048, 10.0
      %v1057 = vmul.f32 %v1049, 10.0
      %v1058 = vmul.f32 %v1050, 10.0
      %v1059 = vmul.f32 %v1051, 10.0
      %v1060 = vmul.f32 %v1052, 10.0
      %v1061 = vmin.f32 %v1053, 0.0
      %v1062 = vmin.f32 %v1054, 0.0
      %v1063 = vmin.f32 %v1055, 0.0
      %v1064 = vmin.f32 %v1056, 0.0
      %v1065 = vmin.f32 %v1057, 0.0
      %v1066 = vmin.f32 %v1058, 0.0
      %v1067 = vmin.f32 %v1059, 0.0
      %v1068 = vmin.f32 %v1060, 0.0
      %v1069 = vand.u32 2147483647, %v1053
      %v1070 = vand.u32 2147483647, %v1054
      %v1071 = vand.u32 2147483647, %v1055
      %v1072 = vand.u32 2147483647, %v1056
      %v1073 = vand.u32 2147483647, %v1057
      %v1074 = vand.u32 2147483647, %v1058
      %v1075 = vand.u32 2147483647, %v1059
      %v1076 = vand.u32 2147483647, %v1060
      %v1077 = vsub.f32 0.0, %v1069
      %v1078 = vsub.f32 0.0, %v1070
      %v1079 = vsub.f32 0.0, %v1071
      %v1080 = vsub.f32 0.0, %v1072
      %v1081 = vsub.f32 0.0, %v1073
      %v1082 = vsub.f32 0.0, %v1074
      %v1083 = vsub.f32 0.0, %v1075
      %v1084 = vsub.f32 0.0, %v1076
      %v1085 = vmul.f32 %v1077, 1.442695
      %v1086 = vpow.pop %v1085
      %v1087 = vmul.f32 %v1078, 1.442695
      %v1088 = vpow.pop %v1087
      %v1089 = vmul.f32 %v1079, 1.442695
      %v1090 = vpow.pop %v1089
      %v1091 = vmul.f32 %v1080, 1.442695
      %v1092 = vpow.pop %v1091
      %v1093 = vmul.f32 %v1081, 1.442695
      %v1094 = vpow.pop %v1093
      %v1095 = vmul.f32 %v1082, 1.442695
      %v1096 = vpow.pop %v1095
      %v1097 = vmul.f32 %v1083, 1.442695
      %v1098 = vpow.pop %v1097
      %v1099 = vmul.f32 %v1084, 1.442695
      %v1100 = vpow.pop %v1099
      %v1101 = vadd.f32 %v1086, 1.0
      %v1102 = vadd.f32 %v1088, 1.0
      %v1103 = vadd.f32 %v1090, 1.0
      %v1104 = vadd.f32 %v1092, 1.0
      %v1105 = vadd.f32 %v1094, 1.0
      %v1106 = vadd.f32 %v1096, 1.0
      %v1107 = vadd.f32 %v1098, 1.0
      %v1108 = vadd.f32 %v1100, 1.0
      %v1109 = vlog2.pop %v1101
      %v1110 = vmul.f32 %v1109, 0.6931472
      %v1111 = vlog2.pop %v1102
      %v1112 = vmul.f32 %v1111, 0.6931472
      %v1113 = vlog2.pop %v1103
      %v1114 = vmul.f32 %v1113, 0.6931472
      %v1115 = vlog2.pop %v1104
      %v1116 = vmul.f32 %v1115, 0.6931472
      %v1117 = vlog2.pop %v1105
      %v1118 = vmul.f32 %v1117, 0.6931472
      %v1119 = vlog2.pop %v1106
      %v1120 = vmul.f32 %v1119, 0.6931472
      %v1121 = vlog2.pop %v1107
      %v1122 = vmul.f32 %v1121, 0.6931472
      %v1123 = vlog2.pop %v1108
      %v1124 = vmul.f32 %v1123, 0.6931472
      %v1125 = vsub.f32 %v1061, %v1110
      %v1126 = vsub.f32 %v1062, %v1112
      %v1127 = vsub.f32 %v1063, %v1114
      %v1128 = vsub.f32 %v1064, %v1116
      %v1129 = vsub.f32 %v1065, %v1118
      %v1130 = vsub.f32 %v1066, %v1120
      %v1131 = vsub.f32 %v1067, %v1122
      %v1132 = vsub.f32 %v1068, %v1124
      %v1133 = vsub.f32 0.0, %v1125
      %v1134 = vsub.f32 0.0, %v1126
      %v1135 = vsub.f32 0.0, %v1127
      %v1136 = vsub.f32 0.0, %v1128
      %v1137 = vsub.f32 0.0, %v1129
      %v1138 = vsub.f32 0.0, %v1130
      %v1139 = vsub.f32 0.0, %v1131
      %v1140 = vsub.f32 0.0, %v1132
      %v1141 = vrcp.pop %v1015
      %v1142 = vmul.f32 %v1015, %v1141
      %v1143 = vsub.f32 1.0, %v1142
      %v1144 = vmul.f32 %v1141, %v1143
      %v1145 = vadd.f32 %v1141, %v1144
      %vm1146 = vweird.f32 %v1015
      %vm1147 = vweird.f32 %v1141
      %vm1148 = vmor %vm1146, %vm1147
      %v1149 = vsel %vm1148, %v1141, %v1145
      %v1150 = vand.u32 2147483647, %v1015
      %vm1151 = vcmp.eq.f32.partialorder %v1150, 8.507059e+37
      %v1152 = vand.u32 %v1015, 2147483648
      %v1153 = vor.u32 1.1754944e-38, %v1152
      %v1154 = vsel %vm1151, %v1153, %v1149
      %v1155 = vrcp.pop %v1018
      %v1156 = vmul.f32 %v1018, %v1155
      %v1157 = vsub.f32 1.0, %v1156
      %v1158 = vmul.f32 %v1155, %v1157
      %v1159 = vadd.f32 %v1155, %v1158
      %vm1160 = vweird.f32 %v1018
      %vm1161 = vweird.f32 %v1155
      %vm1162 = vmor %vm1160, %vm1161
      %v1163 = vsel %vm1162, %v1155, %v1159
      %v1164 = vand.u32 2147483647, %v1018
      %vm1165 = vcmp.eq.f32.partialorder %v1164, 8.507059e+37
      %v1166 = vand.u32 %v1018, 2147483648
      %v1167 = vor.u32 1.1754944e-38, %v1166
      %v1168 = vsel %vm1165, %v1167, %v1163
      %v1169 = vrcp.pop %v1021
      %v1170 = vmul.f32 %v1021, %v1169
      %v1171 = vsub.f32 1.0, %v1170
      %v1172 = vmul.f32 %v1169, %v1171
      %v1173 = vadd.f32 %v1169, %v1172
      %vm1174 = vweird.f32 %v1021
      %vm1175 = vweird.f32 %v1169
      %vm1176 = vmor %vm1174, %vm1175
      %v1177 = vsel %vm1176, %v1169, %v1173
      %v1178 = vand.u32 2147483647, %v1021
      %vm1179 = vcmp.eq.f32.partialorder %v1178, 8.507059e+37
      %v1180 = vand.u32 %v1021, 2147483648
      %v1181 = vor.u32 1.1754944e-38, %v1180
      %v1182 = vsel %vm1179, %v1181, %v1177
      %v1183 = vrcp.pop %v1024
      %v1184 = vmul.f32 %v1024, %v1183
      %v1185 = vsub.f32 1.0, %v1184
      %v1186 = vmul.f32 %v1183, %v1185
      %v1187 = vadd.f32 %v1183, %v1186
      %vm1188 = vweird.f32 %v1024
      %vm1189 = vweird.f32 %v1183
      %vm1190 = vmor %vm1188, %vm1189
      %v1191 = vsel %vm1190, %v1183, %v1187
      %v1192 = vand.u32 2147483647, %v1024
      %vm1193 = vcmp.eq.f32.partialorder %v1192, 8.507059e+37
      %v1194 = vand.u32 %v1024, 2147483648
      %v1195 = vor.u32 1.1754944e-38, %v1194
      %v1196 = vsel %vm1193, %v1195, %v1191
      %v1197 = vrcp.pop %v1027
      %v1198 = vmul.f32 %v1027, %v1197
      %v1199 = vsub.f32 1.0, %v1198
      %v1200 = vmul.f32 %v1197, %v1199
      %v1201 = vadd.f32 %v1197, %v1200
      %vm1202 = vweird.f32 %v1027
      %vm1203 = vweird.f32 %v1197
      %vm1204 = vmor %vm1202, %vm1203
      %v1205 = vsel %vm1204, %v1197, %v1201
      %v1206 = vand.u32 2147483647, %v1027
      %vm1207 = vcmp.eq.f32.partialorder %v1206, 8.507059e+37
      %v1208 = vand.u32 %v1027, 2147483648
      %v1209 = vor.u32 1.1754944e-38, %v1208
      %v1210 = vsel %vm1207, %v1209, %v1205
      %v1211 = vrcp.pop %v1030
      %v1212 = vmul.f32 %v1030, %v1211
      %v1213 = vsub.f32 1.0, %v1212
      %v1214 = vmul.f32 %v1211, %v1213
      %v1215 = vadd.f32 %v1211, %v1214
      %vm1216 = vweird.f32 %v1030
      %vm1217 = vweird.f32 %v1211
      %vm1218 = vmor %vm1216, %vm1217
      %v1219 = vsel %vm1218, %v1211, %v1215
      %v1220 = vand.u32 2147483647, %v1030
      %vm1221 = vcmp.eq.f32.partialorder %v1220, 8.507059e+37
      %v1222 = vand.u32 %v1030, 2147483648
      %v1223 = vor.u32 1.1754944e-38, %v1222
      %v1224 = vsel %vm1221, %v1223, %v1219
      %v1225 = vrcp.pop %v1033
      %v1226 = vmul.f32 %v1033, %v1225
      %v1227 = vsub.f32 1.0, %v1226
      %v1228 = vmul.f32 %v1225, %v1227
      %v1229 = vadd.f32 %v1225, %v1228
      %vm1230 = vweird.f32 %v1033
      %vm1231 = vweird.f32 %v1225
      %vm1232 = vmor %vm1230, %vm1231
      %v1233 = vsel %vm1232, %v1225, %v1229
      %v1234 = vand.u32 2147483647, %v1033
      %vm1235 = vcmp.eq.f32.partialorder %v1234, 8.507059e+37
      %v1236 = vand.u32 %v1033, 2147483648
      %v1237 = vor.u32 1.1754944e-38, %v1236
      %v1238 = vsel %vm1235, %v1237, %v1233
      %v1239 = vrcp.pop %v1036
      %v1240 = vmul.f32 %v1036, %v1239
      %v1241 = vsub.f32 1.0, %v1240
      %v1242 = vmul.f32 %v1239, %v1241
      %v1243 = vadd.f32 %v1239, %v1242
      %vm1244 = vweird.f32 %v1036
      %vm1245 = vweird.f32 %v1239
      %vm1246 = vmor %vm1244, %vm1245
      %v1247 = vsel %vm1246, %v1239, %v1243
      %v1248 = vand.u32 2147483647, %v1036
      %vm1249 = vcmp.eq.f32.partialorder %v1248, 8.507059e+37
      %v1250 = vand.u32 %v1036, 2147483648
      %v1251 = vor.u32 1.1754944e-38, %v1250
      %v1252 = vsel %vm1249, %v1251, %v1247
      %v1253 = vmul.f32 %v871, %v1154
      %v1254 = vmul.f32 %v874, %v1168
      %v1255 = vmul.f32 %v877, %v1182
      %v1256 = vmul.f32 %v880, %v1196
      %v1257 = vmul.f32 %v883, %v1210
      %v1258 = vmul.f32 %v886, %v1224
      %v1259 = vmul.f32 %v889, %v1238
      %v1260 = vmul.f32 %v892, %v1252
      %v1261 = vsub.f32 %v1253, 1.0
      %v1262 = vsub.f32 %v1254, 1.0
      %v1263 = vsub.f32 %v1255, 1.0
      %v1264 = vsub.f32 %v1256, 1.0
      %v1265 = vsub.f32 %v1257, 1.0
      %v1266 = vsub.f32 %v1258, 1.0
      %v1267 = vsub.f32 %v1259, 1.0
      %v1268 = vsub.f32 %v1260, 1.0
      %v1269 = vmul.f32 %v1261, %v1261
      %v1270 = vmul.f32 %v1262, %v1262
      %v1271 = vmul.f32 %v1263, %v1263
      %v1272 = vmul.f32 %v1264, %v1264
      %v1273 = vmul.f32 %v1265, %v1265
      %v1274 = vmul.f32 %v1266, %v1266
      %v1275 = vmul.f32 %v1267, %v1267
      %v1276 = vmul.f32 %v1268, %v1268
      %v1277 = vmul.f32 %v959, %v1154
      %v1278 = vmul.f32 %v962, %v1168
      %v1279 = vmul.f32 %v965, %v1182
      %v1280 = vmul.f32 %v968, %v1196
      %v1281 = vmul.f32 %v971, %v1210
      %v1282 = vmul.f32 %v974, %v1224
      %v1283 = vmul.f32 %v977, %v1238
      %v1284 = vmul.f32 %v980, %v1252
      %v1285 = vmul.f32 %v1277, %v1277
      %v1286 = vmul.f32 %v1278, %v1278
      %v1287 = vmul.f32 %v1279, %v1279
      %v1288 = vmul.f32 %v1280, %v1280
      %v1289 = vmul.f32 %v1281, %v1281
      %v1290 = vmul.f32 %v1282, %v1282
      %v1291 = vmul.f32 %v1283, %v1283
      %v1292 = vmul.f32 %v1284, %v1284
      %vm1293 = vcmp.eq.s32.totalorder %v273, 1
      %vm1294 = vcmp.eq.s32.totalorder %v273, 2
      %v1295 = vsel %vm1294, %v1285, 0.0
      %v1296 = vsel %vm1294, %v1286, 0.0
      %v1297 = vsel %vm1294, %v1287, 0.0
      %v1298 = vsel %vm1294, %v1288, 0.0
      %v1299 = vsel %vm1294, %v1289, 0.0
      %v1300 = vsel %vm1294, %v1290, 0.0
      %v1301 = vsel %vm1294, %v1291, 0.0
      %v1302 = vsel %vm1294, %v1292, 0.0
      %v1303 = vsel %vm1293, %v1269, %v1295
      %v1304 = vsel %vm1293, %v1270, %v1296
      %v1305 = vsel %vm1293, %v1271, %v1297
      %v1306 = vsel %vm1293, %v1272, %v1298
      %v1307 = vsel %vm1293, %v1273, %v1299
      %v1308 = vsel %vm1293, %v1274, %v1300
      %v1309 = vsel %vm1293, %v1275, %v1301
      %v1310 = vsel %vm1293, %v1276, %v1302
      %v1311 = vsel %vm274, %v1133, %v1303
      %v1312 = vsel %vm274, %v1134, %v1304
      %v1313 = vsel %vm274, %v1135, %v1305
      %v1314 = vsel %vm274, %v1136, %v1306
      %v1315 = vsel %vm274, %v1137, %v1307
      %v1316 = vsel %vm274, %v1138, %v1308
      %v1317 = vsel %vm274, %v1139, %v1309
      %v1318 = vsel %vm274, %v1140, %v1310
      %1319 = vst [vmem:[%s270] sm:$0xff] %v1311
      %1320 = vst [vmem:[%s270 + $0x8] sm:$0xff] %v1312
      %1321 = vst [vmem:[%s270 + $0x10] sm:$0xff] %v1313
      %1322 = vst [vmem:[%s270 + $0x18] sm:$0xff] %v1314
      %1323 = vst [vmem:[%s270 + $0x20] sm:$0xff] %v1315
      %1324 = vst [vmem:[%s270 + $0x28] sm:$0xff] %v1316
      %1325 = vst [vmem:[%s270 + $0x30] sm:$0xff] %v1317
      %1326 = vst [vmem:[%s270 + $0x38] sm:$0xff] %v1318
      %s1327 = smul.u32 8, %s16
      %p1328 = scmp.lt.s32.totalorder %s1327, 31
      %s1329 = scalar_select %p1328, %s1327, 31
      %s1330 = smul.addr %s1329, 8
      %s1331 = scalar_lea.vmem %s5, %s1330
      // Predicated region
      $region41: #{fuzzqe_forward.1} parent=39 // pred_check
        %p1332 = pneg %p154
      $region42: #{fuzzqe_forward.1} parent=39 // pred_check_branch
        %1334 = sbr.rel (%p1332) target = $region44
      $region43: #{fuzzqe_forward.1} parent=39 // pred_region
        %s1335 = smul.u32 8, %s16
      $region44: #{fuzzqe_forward.1} parent=39 // pred_fallthru
        _
    $region40: #{fuzzqe_forward.1} parent=5 // pred_fallthru
      _
    %p1336 = scmp.le.s32.totalorder 2, %s11
    // Predicated region
    $region45: #{fuzzqe_forward.1} parent=5 // pred_check
      %p1337 = pneg %p1336
    $region46: #{fuzzqe_forward.1} parent=5 // pred_check_branch
      %1339 = sbr.rel (%p1337) target = $region48
    $region47: #{fuzzqe_forward.1} parent=5 // pred_region
      %s1340 = ssub.s32 %s11, 2
      // Predicated region
      $region49: #{fuzzqe_forward.1} parent=47 // pred_check
        %p1341 = pneg %p160
      $region50: #{fuzzqe_forward.1} parent=47 // pred_check_branch
        %1343 = sbr.rel (%p1341) target = $region52
      $region51: #{fuzzqe_forward.1} parent=47 // pred_region
        %s1344 = smul.u32 8, %s17
        %p1345 = scmp.lt.s32.totalorder %s1344, 31
        %s1346 = scalar_select %p1345, %s1344, 31
        %s1347 = smul.addr %s1346, 8
        %s1348 = scalar_lea.vmem %s5, %s1347
      $region52: #{fuzzqe_forward.1} parent=47 // pred_fallthru
        _
    $region48: #{fuzzqe_forward.1} parent=5 // pred_fallthru
      _
  $region6: #{fuzzqe_forward.1} parent=0 // loop_footer
    %s15 = sadd.s32 1, %s11
  $region7: #{fuzzqe_forward.1} parent=0 // loop_footer_branch
    %10 = sbr.rel target = $region3
  $region8: #{fuzzqe_forward.1} parent=0 // loop_exit
    _

</llo_original>
